<compile_context>
chip_gen: v7x
topology: tpu7x:2x2x1
jax: 0.10.0
libtpu: 0.0.40
codegen_flags: <defaults>
</compile_context>

<pallas_src>
import jax
import jax.numpy as jnp
from jax.experimental import pallas as pl
from jax.experimental.pallas import tpu as pltpu

NUM_BINS = 8
MIN_BIN_WIDTH = 1e-3
MIN_BIN_HEIGHT = 1e-3
MIN_DERIVATIVE = 1e-3
BN_EPS = 1e-5


def _round_up(n, m):
    return ((n + m - 1) // m) * m


# ---------------------------------------------------------------------------
# Fused kernel: conditioner MLP (3 matmuls) + rational-quadratic spline.
# ---------------------------------------------------------------------------
def _coupling_kernel(tr_ref, id_ref,
                     w1_ref, b1_ref, s1_ref, t1_ref,
                     w2_ref, b2_ref, s2_ref, t2_ref,
                     w3_ref, b3_ref,
                     o_ref, ld_ref, tp_ref):
    K = NUM_BINS
    M = id_ref.shape[-1]

    # ---- conditioner MLP: (Linear -> ReLU -> BN(folded) -> Dropout(id)) x2 -> Linear
    # NOTE: kept in f32; at these GEMM shapes the MXU is far from the bottleneck.
    h = jnp.dot(tr_ref[...], w1_ref[...],
                preferred_element_type=jnp.float32) + b1_ref[...]
    h = jnp.maximum(h, 0.0) * s1_ref[...] + t1_ref[...]
    h = jnp.dot(h, w2_ref[...],
                preferred_element_type=jnp.float32) + b2_ref[...]
    h = jnp.maximum(h, 0.0) * s2_ref[...] + t2_ref[...]
    # spline params, column layout [param(3)][bin(K)][feature(M)] -> VMEM scratch
    tp_ref[...] = jnp.dot(h, w3_ref[...],
                          preferred_element_type=jnp.float32) + b3_ref[...]

    # ---- per-bin lane-dense slabs, each (TB, M)
    w_raw = [tp_ref[:, j * M:(j + 1) * M] for j in range(K)]
    h_raw = [tp_ref[:, (K + j) * M:(K + j + 1) * M] for j in range(K)]
    d_raw = [tp_ref[:, (2 * K + j) * M:(2 * K + j + 1) * M] for j in range(K)]

    def _softmax_bins(raw, min_val):
        m = raw[0]
        for j in range(1, K):
            m = jnp.maximum(m, raw[j])
        e = [jnp.exp(raw[j] - m) for j in range(K)]
        s = e[0]
        for j in range(1, K):
            s = s + e[j]
        inv_s = pl.reciprocal(s, approx=True)        # EUP slot, frees VALU
        scale = 1.0 - min_val * K
        return [min_val + scale * (e[j] * inv_s) for j in range(K)]

    widths = _softmax_bins(w_raw, MIN_BIN_WIDTH)
    heights = _softmax_bins(h_raw, MIN_BIN_HEIGHT)

    def _softplus(v):                                # F.softplus(beta=1, threshold=20)
        return jnp.where(v > 20.0, v,
                         jnp.log(1.0 + jnp.exp(jnp.minimum(v, 20.0))))

    derivs = [MIN_DERIVATIVE + _softplus(d_raw[j]) for j in range(K)]

    # ---- single-pass bin selection + "gather" (one unrolled K loop)
    x = id_ref[...]
    zero = jnp.zeros_like(x)
    pad_deriv = jnp.full_like(x, MIN_DERIVATIVE)     # right pad of knot derivatives
    run_w = zero
    run_h = zero
    in_left = zero
    out_left = zero
    bin_w = zero
    bin_h = zero
    d_l = zero
    d_r = zero
    for j in range(K):
        nxt_w = run_w + widths[j]
        nxt_h = run_h + heights[j]
        if j == 0:
            sel = x <= nxt_w                         # bin 0 also catches x <= 0 (clamp)
        elif j == K - 1:
            sel = x > run_w                          # last bin catches the right tail (clamp)
        else:
            sel = jnp.logical_and(x > run_w, x <= nxt_w)
        in_left = jnp.where(sel, run_w, in_left)
        out_left = jnp.where(sel, run_h, out_left)
        bin_w = jnp.where(sel, widths[j], bin_w)
        bin_h = jnp.where(sel, heights[j], bin_h)
        d_l = jnp.where(sel, derivs[j], d_l)
        d_r = jnp.where(sel, derivs[j + 1] if j + 1 < K else pad_deriv, d_r)
        run_w = nxt_w
        run_h = nxt_h

    # ---- rational quadratic spline (same algebra as the PyTorch reference)
    t = jnp.clip((x - in_left) * pl.reciprocal(bin_w, approx=True), 0.0, 1.0)
    omt = 1.0 - t
    numer = bin_h * (d_l * t * t + 2.0 * t * omt)
    denom = d_l + (d_r - d_l) * t
    inv_den = pl.reciprocal(denom, approx=True)
    o_ref[...] = out_left + numer * inv_den
    # log(bh) + 2*log(q) - log(den) fused into a single transcendental
    q = 2.0 * t * omt * d_r + d_l
    ld_ref[...] = jnp.sum(jnp.log(bin_h * q * q * inv_den),
                          axis=-1, keepdims=True)


def _coupling_pallas(transform, identity, p, tile_b):
    b_pad, m = identity.shape
    out_dim = 3 * NUM_BINS * m

    def tiled(shape):
        return pl.BlockSpec(shape, lambda i: (i, 0))

    def resident(arr):
        return pl.BlockSpec(arr.shape, lambda i: (0, 0))

    args = (transform, identity,
            p["w1"], p["b1"], p["s1"], p["t1"],
            p["w2"], p["b2"], p["s2"], p["t2"],
            p["w3p"], p["b3p"])
    in_specs = ([tiled((tile_b, m)), tiled((tile_b, m))]
                + [resident(a) for a in args[2:]])

    return pl.pallas_call(
        _coupling_kernel,
        out_shape=(jax.ShapeDtypeStruct((b_pad, m), jnp.float32),
                   jax.ShapeDtypeStruct((b_pad, 1), jnp.float32)),
        grid_spec=pltpu.PrefetchScalarGridSpec(
            num_scalar_prefetch=0,
            grid=(b_pad // tile_b,),
            in_specs=in_specs,
            out_specs=[tiled((tile_b, m)), tiled((tile_b, 1))],
            scratch_shapes=[pltpu.VMEM((tile_b, out_dim), jnp.float32)]),
        compiler_params=pltpu.CompilerParams(
            dimension_semantics=("parallel",)),      # shards batch across v7x's 2 TCs
    )(*args)


# ---------------------------------------------------------------------------
# CouplingLayer forward (wrapper glue: even/odd split + interleave are tiny
# XLA ops on a (B, D) array; everything heavy stays inside the fused kernel).
# ---------------------------------------------------------------------------
def coupling_forward(x, params):
    B, D = x.shape
    M = D // 2
    identity = x[:, 1::2]      # mask = arange(D) % 2 -> odd columns (transformed path)
    transform = x[:, 0::2]     # ~mask -> even columns (conditioner input)

    # static column permutation of the last Linear so the MLP output is laid
    # out [param][bin][feature] (lane-dense per-bin slabs inside the kernel)
    h2 = params["w3"].shape[0]
    w3p = jnp.transpose(params["w3"].reshape(h2, M, 3, NUM_BINS),
                        (0, 2, 3, 1)).reshape(h2, 3 * NUM_BINS * M)
    b3p = jnp.transpose(params["b3"].reshape(1, M, 3, NUM_BINS),
                        (0, 2, 3, 1)).reshape(1, 3 * NUM_BINS * M)
    p = dict(params, w3p=w3p, b3p=b3p)

    # batch tile: multiple of 8 sublanes; capped so the double-buffered tile
    # footprint stays far below v7x's 64 MiB VMEM (larger tiles amortize the
    # ~0.35 us/step pipeline overhead on v5e/v6e too).
    tile_b = min(_round_up(B, 8), 512)
    b_pad = _round_up(B, tile_b)
    if b_pad != B:
        pad = ((0, b_pad - B), (0, 0))
        transform_p = jnp.pad(transform, pad)
        identity_p = jnp.pad(identity, pad)
    else:
        transform_p, identity_p = transform, identity

    transformed, log_det = _coupling_pallas(transform_p, identity_p, p, tile_b)
    transformed = transformed[:B]
    log_det = log_det[:B, 0]

    # interleave back: even columns keep `transform`, odd columns get spline output
    output = jnp.stack([transform, transformed], axis=-1).reshape(B, D)
    return output, log_det


# ---------------------------------------------------------------------------
# deterministic parameter init (PyTorch Linear default init, BN default state)
# ---------------------------------------------------------------------------
def init_params(key, in_dim, hidden_dims, out_dim):
    dims = [in_dim] + list(hidden_dims) + [out_dim]
    ks = jax.random.split(key, 2 * (len(dims) - 1))
    p = {}
    for i in range(len(dims) - 1):
        fan_in, fan_out = dims[i], dims[i + 1]
        bound = 1.0 / (fan_in ** 0.5)
        p[f"w{i + 1}"] = jax.random.uniform(
            ks[2 * i], (fan_in, fan_out), jnp.float32, -bound, bound)
        p[f"b{i + 1}"] = jax.random.uniform(
            ks[2 * i + 1], (1, fan_out), jnp.float32, -bound, bound)
    # BatchNorm1d default state: gamma=1, beta=0, running_mean=0, running_var=1
    for i, h in enumerate(hidden_dims):
        gamma = jnp.ones((1, h), jnp.float32)
        beta = jnp.zeros((1, h), jnp.float32)
        rmean = jnp.zeros((1, h), jnp.float32)
        rvar = jnp.ones((1, h), jnp.float32)
        scale = gamma / jnp.sqrt(rvar + BN_EPS)
        shift = beta - rmean * scale
        p[f"s{i + 1}"] = scale
        p[f"t{i + 1}"] = shift
    return p


if __name__ == "__main__":
    B, D = 8, 16                  # batch=8, input_dim=16 (alternate mask -> 8/8 split)
    HIDDEN = (32, 32)
    key = jax.random.PRNGKey(0)
    kx, kp = jax.random.split(key)
    x = jax.random.normal(kx, (B, D), jnp.float32)
    params = init_params(kp, D // 2, HIDDEN, (D // 2) * NUM_BINS * 3)

    out, log_det = jax.jit(coupling_forward)(x, params)
    jax.block_until_ready((out, log_det))

    assert out.shape == (B, D) and log_det.shape == (B,)
    assert bool(jnp.all(jnp.isfinite(out))) and bool(jnp.all(jnp.isfinite(log_det)))
    print("KERNEL_OK")
</pallas_src>

<mosaic_0001>
module attributes {stable_mosaic.version = 11 : i64} {
  func.func @_coupling_kernel(%arg0: i32, %arg1: memref<8x8xf32, #tpu.memory_space<vmem>>, %arg2: memref<8x8xf32, #tpu.memory_space<vmem>>, %arg3: memref<8x32xf32, #tpu.memory_space<vmem>>, %arg4: memref<1x32xf32, #tpu.memory_space<vmem>>, %arg5: memref<1x32xf32, #tpu.memory_space<vmem>>, %arg6: memref<1x32xf32, #tpu.memory_space<vmem>>, %arg7: memref<32x32xf32, #tpu.memory_space<vmem>>, %arg8: memref<1x32xf32, #tpu.memory_space<vmem>>, %arg9: memref<1x32xf32, #tpu.memory_space<vmem>>, %arg10: memref<1x32xf32, #tpu.memory_space<vmem>>, %arg11: memref<32x192xf32, #tpu.memory_space<vmem>>, %arg12: memref<1x192xf32, #tpu.memory_space<vmem>>, %arg13: memref<8x8xf32, #tpu.memory_space<vmem>>, %arg14: memref<8x1xf32, #tpu.memory_space<vmem>>, %arg15: memref<8x192xf32, #tpu.memory_space<vmem>>) attributes {dimension_semantics = [#tpu.dimension_semantics<parallel>], iteration_bounds = array<i64: 1>, scalar_prefetch = 0 : i64, scratch_operands = 1 : i64, tpu.core_type = #tpu.core_type<tc>, window_params = [{transform_indices = @transform_0, window_bounds = array<i64: 8, 8>}, {transform_indices = @transform_1, window_bounds = array<i64: 8, 8>}, {pipeline_mode = #tpu.pipeline_mode<synchronous>, transform_indices = @transform_2, window_bounds = array<i64: 8, 32>}, {pipeline_mode = #tpu.pipeline_mode<synchronous>, transform_indices = @transform_3, window_bounds = array<i64: 1, 32>}, {pipeline_mode = #tpu.pipeline_mode<synchronous>, transform_indices = @transform_4, window_bounds = array<i64: 1, 32>}, {pipeline_mode = #tpu.pipeline_mode<synchronous>, transform_indices = @transform_5, window_bounds = array<i64: 1, 32>}, {pipeline_mode = #tpu.pipeline_mode<synchronous>, transform_indices = @transform_6, window_bounds = array<i64: 32, 32>}, {pipeline_mode = #tpu.pipeline_mode<synchronous>, transform_indices = @transform_7, window_bounds = array<i64: 1, 32>}, {pipeline_mode = #tpu.pipeline_mode<synchronous>, transform_indices = @transform_8, window_bounds = array<i64: 1, 32>}, {pipeline_mode = #tpu.pipeline_mode<synchronous>, transform_indices = @transform_9, window_bounds = array<i64: 1, 32>}, {pipeline_mode = #tpu.pipeline_mode<synchronous>, transform_indices = @transform_10, window_bounds = array<i64: 32, 192>}, {pipeline_mode = #tpu.pipeline_mode<synchronous>, transform_indices = @transform_11, window_bounds = array<i64: 1, 192>}, {transform_indices = @transform_12, window_bounds = array<i64: 8, 8>}, {transform_indices = @transform_13, window_bounds = array<i64: 8, 1>}]} {
    %c0 = arith.constant 0 : index
    %c0_0 = arith.constant 0 : index
    %0 = vector.load %arg1[%c0, %c0_0] : memref<8x8xf32, #tpu.memory_space<vmem>>, vector<8x8xf32>
    %c0_1 = arith.constant 0 : index
    %c0_2 = arith.constant 0 : index
    %1 = vector.load %arg3[%c0_1, %c0_2] : memref<8x32xf32, #tpu.memory_space<vmem>>, vector<8x32xf32>
    %cst = arith.constant dense<0.000000e+00> : vector<8x32xf32>
    %2 = tpu.matmul %0, %1, %cst {dimension_numbers = #tpu.dot_dimension_numbers<[1], [0], [0], [1], [0, 0, 1, 1], [], []>} : vector<8x8xf32>, vector<8x32xf32>, vector<8x32xf32> -> vector<8x32xf32>
    %c0_3 = arith.constant 0 : index
    %c0_4 = arith.constant 0 : index
    %3 = vector.load %arg4[%c0_3, %c0_4] : memref<1x32xf32, #tpu.memory_space<vmem>>, vector<1x32xf32>
    %4 = vector.broadcast %3 : vector<1x32xf32> to vector<8x32xf32>
    %5 = arith.addf %2, %4 : vector<8x32xf32>
    %cst_5 = arith.constant 0.000000e+00 : f32
    %6 = vector.broadcast %cst_5 : f32 to vector<8x32xf32>
    %7 = arith.maximumf %5, %6 : vector<8x32xf32>
    %c0_6 = arith.constant 0 : index
    %c0_7 = arith.constant 0 : index
    %8 = vector.load %arg5[%c0_6, %c0_7] : memref<1x32xf32, #tpu.memory_space<vmem>>, vector<1x32xf32>
    %9 = vector.broadcast %8 : vector<1x32xf32> to vector<8x32xf32>
    %10 = arith.mulf %7, %9 : vector<8x32xf32>
    %c0_8 = arith.constant 0 : index
    %c0_9 = arith.constant 0 : index
    %11 = vector.load %arg6[%c0_8, %c0_9] : memref<1x32xf32, #tpu.memory_space<vmem>>, vector<1x32xf32>
    %12 = vector.broadcast %11 : vector<1x32xf32> to vector<8x32xf32>
    %13 = arith.addf %10, %12 : vector<8x32xf32>
    %c0_10 = arith.constant 0 : index
    %c0_11 = arith.constant 0 : index
    %14 = vector.load %arg7[%c0_10, %c0_11] : memref<32x32xf32, #tpu.memory_space<vmem>>, vector<32x32xf32>
    %cst_12 = arith.constant dense<0.000000e+00> : vector<8x32xf32>
    %15 = tpu.matmul %13, %14, %cst_12 {dimension_numbers = #tpu.dot_dimension_numbers<[1], [0], [0], [1], [0, 0, 1, 1], [], []>} : vector<8x32xf32>, vector<32x32xf32>, vector<8x32xf32> -> vector<8x32xf32>
    %c0_13 = arith.constant 0 : index
    %c0_14 = arith.constant 0 : index
    %16 = vector.load %arg8[%c0_13, %c0_14] : memref<1x32xf32, #tpu.memory_space<vmem>>, vector<1x32xf32>
    %17 = vector.broadcast %16 : vector<1x32xf32> to vector<8x32xf32>
    %18 = arith.addf %15, %17 : vector<8x32xf32>
    %cst_15 = arith.constant 0.000000e+00 : f32
    %19 = vector.broadcast %cst_15 : f32 to vector<8x32xf32>
    %20 = arith.maximumf %18, %19 : vector<8x32xf32>
    %c0_16 = arith.constant 0 : index
    %c0_17 = arith.constant 0 : index
    %21 = vector.load %arg9[%c0_16, %c0_17] : memref<1x32xf32, #tpu.memory_space<vmem>>, vector<1x32xf32>
    %22 = vector.broadcast %21 : vector<1x32xf32> to vector<8x32xf32>
    %23 = arith.mulf %20, %22 : vector<8x32xf32>
    %c0_18 = arith.constant 0 : index
    %c0_19 = arith.constant 0 : index
    %24 = vector.load %arg10[%c0_18, %c0_19] : memref<1x32xf32, #tpu.memory_space<vmem>>, vector<1x32xf32>
    %25 = vector.broadcast %24 : vector<1x32xf32> to vector<8x32xf32>
    %26 = arith.addf %23, %25 : vector<8x32xf32>
    %c0_20 = arith.constant 0 : index
    %c0_21 = arith.constant 0 : index
    %27 = vector.load %arg11[%c0_20, %c0_21] : memref<32x192xf32, #tpu.memory_space<vmem>>, vector<32x192xf32>
    %cst_22 = arith.constant dense<0.000000e+00> : vector<8x192xf32>
    %28 = tpu.matmul %26, %27, %cst_22 {dimension_numbers = #tpu.dot_dimension_numbers<[1], [0], [0], [1], [0, 0, 1, 1], [], []>} : vector<8x32xf32>, vector<32x192xf32>, vector<8x192xf32> -> vector<8x192xf32>
    %c0_23 = arith.constant 0 : index
    %c0_24 = arith.constant 0 : index
    %29 = vector.load %arg12[%c0_23, %c0_24] : memref<1x192xf32, #tpu.memory_space<vmem>>, vector<1x192xf32>
    %30 = vector.broadcast %29 : vector<1x192xf32> to vector<8x192xf32>
    %31 = arith.addf %28, %30 : vector<8x192xf32>
    %c0_25 = arith.constant 0 : index
    %c0_26 = arith.constant 0 : index
    %32 = vector.load %arg15[%c0_25, %c0_26] : memref<8x192xf32, #tpu.memory_space<vmem>>, vector<8x192xf32>
    tpu.vector_store %arg15[%c0_25, %c0_26], %31 {strides = array<i32>} : memref<8x192xf32, #tpu.memory_space<vmem>>, vector<8x192xf32>,
    %c0_27 = arith.constant 0 : index
    %c0_28 = arith.constant 0 : index
    %33 = vector.load %arg15[%c0_27, %c0_28] : memref<8x192xf32, #tpu.memory_space<vmem>>, vector<8x8xf32>
    %c0_29 = arith.constant 0 : index
    %c8 = arith.constant 8 : index
    %34 = vector.load %arg15[%c0_29, %c8] : memref<8x192xf32, #tpu.memory_space<vmem>>, vector<8x8xf32>
    %c0_30 = arith.constant 0 : index
    %c16 = arith.constant 16 : index
    %35 = vector.load %arg15[%c0_30, %c16] : memref<8x192xf32, #tpu.memory_space<vmem>>, vector<8x8xf32>
    %c0_31 = arith.constant 0 : index
    %c24 = arith.constant 24 : index
    %36 = vector.load %arg15[%c0_31, %c24] : memref<8x192xf32, #tpu.memory_space<vmem>>, vector<8x8xf32>
    %c0_32 = arith.constant 0 : index
    %c32 = arith.constant 32 : index
    %37 = vector.load %arg15[%c0_32, %c32] : memref<8x192xf32, #tpu.memory_space<vmem>>, vector<8x8xf32>
    %c0_33 = arith.constant 0 : index
    %c40 = arith.constant 40 : index
    %38 = vector.load %arg15[%c0_33, %c40] : memref<8x192xf32, #tpu.memory_space<vmem>>, vector<8x8xf32>
    %c0_34 = arith.constant 0 : index
    %c48 = arith.constant 48 : index
    %39 = vector.load %arg15[%c0_34, %c48] : memref<8x192xf32, #tpu.memory_space<vmem>>, vector<8x8xf32>
    %c0_35 = arith.constant 0 : index
    %c56 = arith.constant 56 : index
    %40 = vector.load %arg15[%c0_35, %c56] : memref<8x192xf32, #tpu.memory_space<vmem>>, vector<8x8xf32>
    %c0_36 = arith.constant 0 : index
    %c64 = arith.constant 64 : index
    %41 = vector.load %arg15[%c0_36, %c64] : memref<8x192xf32, #tpu.memory_space<vmem>>, vector<8x8xf32>
    %c0_37 = arith.constant 0 : index
    %c72 = arith.constant 72 : index
    %42 = vector.load %arg15[%c0_37, %c72] : memref<8x192xf32, #tpu.memory_space<vmem>>, vector<8x8xf32>
    %c0_38 = arith.constant 0 : index
    %c80 = arith.constant 80 : index
    %43 = vector.load %arg15[%c0_38, %c80] : memref<8x192xf32, #tpu.memory_space<vmem>>, vector<8x8xf32>
    %c0_39 = arith.constant 0 : index
    %c88 = arith.constant 88 : index
    %44 = vector.load %arg15[%c0_39, %c88] : memref<8x192xf32, #tpu.memory_space<vmem>>, vector<8x8xf32>
    %c0_40 = arith.constant 0 : index
    %c96 = arith.constant 96 : index
    %45 = vector.load %arg15[%c0_40, %c96] : memref<8x192xf32, #tpu.memory_space<vmem>>, vector<8x8xf32>
    %c0_41 = arith.constant 0 : index
    %c104 = arith.constant 104 : index
    %46 = vector.load %arg15[%c0_41, %c104] : memref<8x192xf32, #tpu.memory_space<vmem>>, vector<8x8xf32>
    %c0_42 = arith.constant 0 : index
    %c112 = arith.constant 112 : index
    %47 = vector.load %arg15[%c0_42, %c112] : memref<8x192xf32, #tpu.memory_space<vmem>>, vector<8x8xf32>
    %c0_43 = arith.constant 0 : index
    %c120 = arith.constant 120 : index
    %48 = vector.load %arg15[%c0_43, %c120] : memref<8x192xf32, #tpu.memory_space<vmem>>, vector<8x8xf32>
    %c0_44 = arith.constant 0 : index
    %c128 = arith.constant 128 : index
    %49 = vector.load %arg15[%c0_44, %c128] : memref<8x192xf32, #tpu.memory_space<vmem>>, vector<8x8xf32>
    %c0_45 = arith.constant 0 : index
    %c136 = arith.constant 136 : index
    %50 = vector.load %arg15[%c0_45, %c136] : memref<8x192xf32, #tpu.memory_space<vmem>>, vector<8x8xf32>
    %c0_46 = arith.constant 0 : index
    %c144 = arith.constant 144 : index
    %51 = vector.load %arg15[%c0_46, %c144] : memref<8x192xf32, #tpu.memory_space<vmem>>, vector<8x8xf32>
    %c0_47 = arith.constant 0 : index
    %c152 = arith.constant 152 : index
    %52 = vector.load %arg15[%c0_47, %c152] : memref<8x192xf32, #tpu.memory_space<vmem>>, vector<8x8xf32>
    %c0_48 = arith.constant 0 : index
    %c160 = arith.constant 160 : index
    %53 = vector.load %arg15[%c0_48, %c160] : memref<8x192xf32, #tpu.memory_space<vmem>>, vector<8x8xf32>
    %c0_49 = arith.constant 0 : index
    %c168 = arith.constant 168 : index
    %54 = vector.load %arg15[%c0_49, %c168] : memref<8x192xf32, #tpu.memory_space<vmem>>, vector<8x8xf32>
    %c0_50 = arith.constant 0 : index
    %c176 = arith.constant 176 : index
    %55 = vector.load %arg15[%c0_50, %c176] : memref<8x192xf32, #tpu.memory_space<vmem>>, vector<8x8xf32>
    %c0_51 = arith.constant 0 : index
    %c184 = arith.constant 184 : index
    %56 = vector.load %arg15[%c0_51, %c184] : memref<8x192xf32, #tpu.memory_space<vmem>>, vector<8x8xf32>
    %57 = arith.maximumf %33, %34 : vector<8x8xf32>
    %58 = arith.maximumf %57, %35 : vector<8x8xf32>
    %59 = arith.maximumf %58, %36 : vector<8x8xf32>
    %60 = arith.maximumf %59, %37 : vector<8x8xf32>
    %61 = arith.maximumf %60, %38 : vector<8x8xf32>
    %62 = arith.maximumf %61, %39 : vector<8x8xf32>
    %63 = arith.maximumf %62, %40 : vector<8x8xf32>
    %64 = arith.subf %33, %63 : vector<8x8xf32>
    %65 = math.exp %64 : vector<8x8xf32>
    %66 = arith.subf %34, %63 : vector<8x8xf32>
    %67 = math.exp %66 : vector<8x8xf32>
    %68 = arith.subf %35, %63 : vector<8x8xf32>
    %69 = math.exp %68 : vector<8x8xf32>
    %70 = arith.subf %36, %63 : vector<8x8xf32>
    %71 = math.exp %70 : vector<8x8xf32>
    %72 = arith.subf %37, %63 : vector<8x8xf32>
    %73 = math.exp %72 : vector<8x8xf32>
    %74 = arith.subf %38, %63 : vector<8x8xf32>
    %75 = math.exp %74 : vector<8x8xf32>
    %76 = arith.subf %39, %63 : vector<8x8xf32>
    %77 = math.exp %76 : vector<8x8xf32>
    %78 = arith.subf %40, %63 : vector<8x8xf32>
    %79 = math.exp %78 : vector<8x8xf32>
    %80 = arith.addf %65, %67 : vector<8x8xf32>
    %81 = arith.addf %80, %69 : vector<8x8xf32>
    %82 = arith.addf %81, %71 : vector<8x8xf32>
    %83 = arith.addf %82, %73 : vector<8x8xf32>
    %84 = arith.addf %83, %75 : vector<8x8xf32>
    %85 = arith.addf %84, %77 : vector<8x8xf32>
    %86 = arith.addf %85, %79 : vector<8x8xf32>
    %87 = tpu.reciprocal %86 {approx = true} : vector<8x8xf32> -> vector<8x8xf32>
    %88 = arith.mulf %65, %87 : vector<8x8xf32>
    %cst_52 = arith.constant 0.991999983 : f32
    %89 = vector.broadcast %cst_52 : f32 to vector<8x8xf32>
    %90 = arith.mulf %89, %88 : vector<8x8xf32>
    %cst_53 = arith.constant 1.000000e-03 : f32
    %91 = vector.broadcast %cst_53 : f32 to vector<8x8xf32>
    %92 = arith.addf %91, %90 : vector<8x8xf32>
    %93 = arith.mulf %67, %87 : vector<8x8xf32>
    %cst_54 = arith.constant 0.991999983 : f32
    %94 = vector.broadcast %cst_54 : f32 to vector<8x8xf32>
    %95 = arith.mulf %94, %93 : vector<8x8xf32>
    %cst_55 = arith.constant 1.000000e-03 : f32
    %96 = vector.broadcast %cst_55 : f32 to vector<8x8xf32>
    %97 = arith.addf %96, %95 : vector<8x8xf32>
    %98 = arith.mulf %69, %87 : vector<8x8xf32>
    %cst_56 = arith.constant 0.991999983 : f32
    %99 = vector.broadcast %cst_56 : f32 to vector<8x8xf32>
    %100 = arith.mulf %99, %98 : vector<8x8xf32>
    %cst_57 = arith.constant 1.000000e-03 : f32
    %101 = vector.broadcast %cst_57 : f32 to vector<8x8xf32>
    %102 = arith.addf %101, %100 : vector<8x8xf32>
    %103 = arith.mulf %71, %87 : vector<8x8xf32>
    %cst_58 = arith.constant 0.991999983 : f32
    %104 = vector.broadcast %cst_58 : f32 to vector<8x8xf32>
    %105 = arith.mulf %104, %103 : vector<8x8xf32>
    %cst_59 = arith.constant 1.000000e-03 : f32
    %106 = vector.broadcast %cst_59 : f32 to vector<8x8xf32>
    %107 = arith.addf %106, %105 : vector<8x8xf32>
    %108 = arith.mulf %73, %87 : vector<8x8xf32>
    %cst_60 = arith.constant 0.991999983 : f32
    %109 = vector.broadcast %cst_60 : f32 to vector<8x8xf32>
    %110 = arith.mulf %109, %108 : vector<8x8xf32>
    %cst_61 = arith.constant 1.000000e-03 : f32
    %111 = vector.broadcast %cst_61 : f32 to vector<8x8xf32>
    %112 = arith.addf %111, %110 : vector<8x8xf32>
    %113 = arith.mulf %75, %87 : vector<8x8xf32>
    %cst_62 = arith.constant 0.991999983 : f32
    %114 = vector.broadcast %cst_62 : f32 to vector<8x8xf32>
    %115 = arith.mulf %114, %113 : vector<8x8xf32>
    %cst_63 = arith.constant 1.000000e-03 : f32
    %116 = vector.broadcast %cst_63 : f32 to vector<8x8xf32>
    %117 = arith.addf %116, %115 : vector<8x8xf32>
    %118 = arith.mulf %77, %87 : vector<8x8xf32>
    %cst_64 = arith.constant 0.991999983 : f32
    %119 = vector.broadcast %cst_64 : f32 to vector<8x8xf32>
    %120 = arith.mulf %119, %118 : vector<8x8xf32>
    %cst_65 = arith.constant 1.000000e-03 : f32
    %121 = vector.broadcast %cst_65 : f32 to vector<8x8xf32>
    %122 = arith.addf %121, %120 : vector<8x8xf32>
    %123 = arith.mulf %79, %87 : vector<8x8xf32>
    %cst_66 = arith.constant 0.991999983 : f32
    %124 = vector.broadcast %cst_66 : f32 to vector<8x8xf32>
    %125 = arith.mulf %124, %123 : vector<8x8xf32>
    %cst_67 = arith.constant 1.000000e-03 : f32
    %126 = vector.broadcast %cst_67 : f32 to vector<8x8xf32>
    %127 = arith.addf %126, %125 : vector<8x8xf32>
    %128 = arith.maximumf %41, %42 : vector<8x8xf32>
    %129 = arith.maximumf %128, %43 : vector<8x8xf32>
    %130 = arith.maximumf %129, %44 : vector<8x8xf32>
    %131 = arith.maximumf %130, %45 : vector<8x8xf32>
    %132 = arith.maximumf %131, %46 : vector<8x8xf32>
    %133 = arith.maximumf %132, %47 : vector<8x8xf32>
    %134 = arith.maximumf %133, %48 : vector<8x8xf32>
    %135 = arith.subf %41, %134 : vector<8x8xf32>
    %136 = math.exp %135 : vector<8x8xf32>
    %137 = arith.subf %42, %134 : vector<8x8xf32>
    %138 = math.exp %137 : vector<8x8xf32>
    %139 = arith.subf %43, %134 : vector<8x8xf32>
    %140 = math.exp %139 : vector<8x8xf32>
    %141 = arith.subf %44, %134 : vector<8x8xf32>
    %142 = math.exp %141 : vector<8x8xf32>
    %143 = arith.subf %45, %134 : vector<8x8xf32>
    %144 = math.exp %143 : vector<8x8xf32>
    %145 = arith.subf %46, %134 : vector<8x8xf32>
    %146 = math.exp %145 : vector<8x8xf32>
    %147 = arith.subf %47, %134 : vector<8x8xf32>
    %148 = math.exp %147 : vector<8x8xf32>
    %149 = arith.subf %48, %134 : vector<8x8xf32>
    %150 = math.exp %149 : vector<8x8xf32>
    %151 = arith.addf %136, %138 : vector<8x8xf32>
    %152 = arith.addf %151, %140 : vector<8x8xf32>
    %153 = arith.addf %152, %142 : vector<8x8xf32>
    %154 = arith.addf %153, %144 : vector<8x8xf32>
    %155 = arith.addf %154, %146 : vector<8x8xf32>
    %156 = arith.addf %155, %148 : vector<8x8xf32>
    %157 = arith.addf %156, %150 : vector<8x8xf32>
    %158 = tpu.reciprocal %157 {approx = true} : vector<8x8xf32> -> vector<8x8xf32>
    %159 = arith.mulf %136, %158 : vector<8x8xf32>
    %cst_68 = arith.constant 0.991999983 : f32
    %160 = vector.broadcast %cst_68 : f32 to vector<8x8xf32>
    %161 = arith.mulf %160, %159 : vector<8x8xf32>
    %cst_69 = arith.constant 1.000000e-03 : f32
    %162 = vector.broadcast %cst_69 : f32 to vector<8x8xf32>
    %163 = arith.addf %162, %161 : vector<8x8xf32>
    %164 = arith.mulf %138, %158 : vector<8x8xf32>
    %cst_70 = arith.constant 0.991999983 : f32
    %165 = vector.broadcast %cst_70 : f32 to vector<8x8xf32>
    %166 = arith.mulf %165, %164 : vector<8x8xf32>
    %cst_71 = arith.constant 1.000000e-03 : f32
    %167 = vector.broadcast %cst_71 : f32 to vector<8x8xf32>
    %168 = arith.addf %167, %166 : vector<8x8xf32>
    %169 = arith.mulf %140, %158 : vector<8x8xf32>
    %cst_72 = arith.constant 0.991999983 : f32
    %170 = vector.broadcast %cst_72 : f32 to vector<8x8xf32>
    %171 = arith.mulf %170, %169 : vector<8x8xf32>
    %cst_73 = arith.constant 1.000000e-03 : f32
    %172 = vector.broadcast %cst_73 : f32 to vector<8x8xf32>
    %173 = arith.addf %172, %171 : vector<8x8xf32>
    %174 = arith.mulf %142, %158 : vector<8x8xf32>
    %cst_74 = arith.constant 0.991999983 : f32
    %175 = vector.broadcast %cst_74 : f32 to vector<8x8xf32>
    %176 = arith.mulf %175, %174 : vector<8x8xf32>
    %cst_75 = arith.constant 1.000000e-03 : f32
    %177 = vector.broadcast %cst_75 : f32 to vector<8x8xf32>
    %178 = arith.addf %177, %176 : vector<8x8xf32>
    %179 = arith.mulf %144, %158 : vector<8x8xf32>
    %cst_76 = arith.constant 0.991999983 : f32
    %180 = vector.broadcast %cst_76 : f32 to vector<8x8xf32>
    %181 = arith.mulf %180, %179 : vector<8x8xf32>
    %cst_77 = arith.constant 1.000000e-03 : f32
    %182 = vector.broadcast %cst_77 : f32 to vector<8x8xf32>
    %183 = arith.addf %182, %181 : vector<8x8xf32>
    %184 = arith.mulf %146, %158 : vector<8x8xf32>
    %cst_78 = arith.constant 0.991999983 : f32
    %185 = vector.broadcast %cst_78 : f32 to vector<8x8xf32>
    %186 = arith.mulf %185, %184 : vector<8x8xf32>
    %cst_79 = arith.constant 1.000000e-03 : f32
    %187 = vector.broadcast %cst_79 : f32 to vector<8x8xf32>
    %188 = arith.addf %187, %186 : vector<8x8xf32>
    %189 = arith.mulf %148, %158 : vector<8x8xf32>
    %cst_80 = arith.constant 0.991999983 : f32
    %190 = vector.broadcast %cst_80 : f32 to vector<8x8xf32>
    %191 = arith.mulf %190, %189 : vector<8x8xf32>
    %cst_81 = arith.constant 1.000000e-03 : f32
    %192 = vector.broadcast %cst_81 : f32 to vector<8x8xf32>
    %193 = arith.addf %192, %191 : vector<8x8xf32>
    %194 = arith.mulf %150, %158 : vector<8x8xf32>
    %cst_82 = arith.constant 0.991999983 : f32
    %195 = vector.broadcast %cst_82 : f32 to vector<8x8xf32>
    %196 = arith.mulf %195, %194 : vector<8x8xf32>
    %cst_83 = arith.constant 1.000000e-03 : f32
    %197 = vector.broadcast %cst_83 : f32 to vector<8x8xf32>
    %198 = arith.addf %197, %196 : vector<8x8xf32>
    %cst_84 = arith.constant 2.000000e+01 : f32
    %199 = vector.broadcast %cst_84 : f32 to vector<8x8xf32>
    %200 = arith.cmpf ogt, %49, %199 : vector<8x8xf32>
    %cst_85 = arith.constant 2.000000e+01 : f32
    %201 = vector.broadcast %cst_85 : f32 to vector<8x8xf32>
    %202 = arith.minimumf %49, %201 : vector<8x8xf32>
    %203 = math.exp %202 : vector<8x8xf32>
    %cst_86 = arith.constant 1.000000e+00 : f32
    %204 = vector.broadcast %cst_86 : f32 to vector<8x8xf32>
    %205 = arith.addf %204, %203 : vector<8x8xf32>
    %206 = math.log %205 : vector<8x8xf32>
    %207 = arith.select %200, %49, %206 : vector<8x8xi1>, vector<8x8xf32>
    %cst_87 = arith.constant 1.000000e-03 : f32
    %208 = vector.broadcast %cst_87 : f32 to vector<8x8xf32>
    %209 = arith.addf %208, %207 : vector<8x8xf32>
    %cst_88 = arith.constant 2.000000e+01 : f32
    %210 = vector.broadcast %cst_88 : f32 to vector<8x8xf32>
    %211 = arith.cmpf ogt, %50, %210 : vector<8x8xf32>
    %cst_89 = arith.constant 2.000000e+01 : f32
    %212 = vector.broadcast %cst_89 : f32 to vector<8x8xf32>
    %213 = arith.minimumf %50, %212 : vector<8x8xf32>
    %214 = math.exp %213 : vector<8x8xf32>
    %cst_90 = arith.constant 1.000000e+00 : f32
    %215 = vector.broadcast %cst_90 : f32 to vector<8x8xf32>
    %216 = arith.addf %215, %214 : vector<8x8xf32>
    %217 = math.log %216 : vector<8x8xf32>
    %218 = arith.select %211, %50, %217 : vector<8x8xi1>, vector<8x8xf32>
    %cst_91 = arith.constant 1.000000e-03 : f32
    %219 = vector.broadcast %cst_91 : f32 to vector<8x8xf32>
    %220 = arith.addf %219, %218 : vector<8x8xf32>
    %cst_92 = arith.constant 2.000000e+01 : f32
    %221 = vector.broadcast %cst_92 : f32 to vector<8x8xf32>
    %222 = arith.cmpf ogt, %51, %221 : vector<8x8xf32>
    %cst_93 = arith.constant 2.000000e+01 : f32
    %223 = vector.broadcast %cst_93 : f32 to vector<8x8xf32>
    %224 = arith.minimumf %51, %223 : vector<8x8xf32>
    %225 = math.exp %224 : vector<8x8xf32>
    %cst_94 = arith.constant 1.000000e+00 : f32
    %226 = vector.broadcast %cst_94 : f32 to vector<8x8xf32>
    %227 = arith.addf %226, %225 : vector<8x8xf32>
    %228 = math.log %227 : vector<8x8xf32>
    %229 = arith.select %222, %51, %228 : vector<8x8xi1>, vector<8x8xf32>
    %cst_95 = arith.constant 1.000000e-03 : f32
    %230 = vector.broadcast %cst_95 : f32 to vector<8x8xf32>
    %231 = arith.addf %230, %229 : vector<8x8xf32>
    %cst_96 = arith.constant 2.000000e+01 : f32
    %232 = vector.broadcast %cst_96 : f32 to vector<8x8xf32>
    %233 = arith.cmpf ogt, %52, %232 : vector<8x8xf32>
    %cst_97 = arith.constant 2.000000e+01 : f32
    %234 = vector.broadcast %cst_97 : f32 to vector<8x8xf32>
    %235 = arith.minimumf %52, %234 : vector<8x8xf32>
    %236 = math.exp %235 : vector<8x8xf32>
    %cst_98 = arith.constant 1.000000e+00 : f32
    %237 = vector.broadcast %cst_98 : f32 to vector<8x8xf32>
    %238 = arith.addf %237, %236 : vector<8x8xf32>
    %239 = math.log %238 : vector<8x8xf32>
    %240 = arith.select %233, %52, %239 : vector<8x8xi1>, vector<8x8xf32>
    %cst_99 = arith.constant 1.000000e-03 : f32
    %241 = vector.broadcast %cst_99 : f32 to vector<8x8xf32>
    %242 = arith.addf %241, %240 : vector<8x8xf32>
    %cst_100 = arith.constant 2.000000e+01 : f32
    %243 = vector.broadcast %cst_100 : f32 to vector<8x8xf32>
    %244 = arith.cmpf ogt, %53, %243 : vector<8x8xf32>
    %cst_101 = arith.constant 2.000000e+01 : f32
    %245 = vector.broadcast %cst_101 : f32 to vector<8x8xf32>
    %246 = arith.minimumf %53, %245 : vector<8x8xf32>
    %247 = math.exp %246 : vector<8x8xf32>
    %cst_102 = arith.constant 1.000000e+00 : f32
    %248 = vector.broadcast %cst_102 : f32 to vector<8x8xf32>
    %249 = arith.addf %248, %247 : vector<8x8xf32>
    %250 = math.log %249 : vector<8x8xf32>
    %251 = arith.select %244, %53, %250 : vector<8x8xi1>, vector<8x8xf32>
    %cst_103 = arith.constant 1.000000e-03 : f32
    %252 = vector.broadcast %cst_103 : f32 to vector<8x8xf32>
    %253 = arith.addf %252, %251 : vector<8x8xf32>
    %cst_104 = arith.constant 2.000000e+01 : f32
    %254 = vector.broadcast %cst_104 : f32 to vector<8x8xf32>
    %255 = arith.cmpf ogt, %54, %254 : vector<8x8xf32>
    %cst_105 = arith.constant 2.000000e+01 : f32
    %256 = vector.broadcast %cst_105 : f32 to vector<8x8xf32>
    %257 = arith.minimumf %54, %256 : vector<8x8xf32>
    %258 = math.exp %257 : vector<8x8xf32>
    %cst_106 = arith.constant 1.000000e+00 : f32
    %259 = vector.broadcast %cst_106 : f32 to vector<8x8xf32>
    %260 = arith.addf %259, %258 : vector<8x8xf32>
    %261 = math.log %260 : vector<8x8xf32>
    %262 = arith.select %255, %54, %261 : vector<8x8xi1>, vector<8x8xf32>
    %cst_107 = arith.constant 1.000000e-03 : f32
    %263 = vector.broadcast %cst_107 : f32 to vector<8x8xf32>
    %264 = arith.addf %263, %262 : vector<8x8xf32>
    %cst_108 = arith.constant 2.000000e+01 : f32
    %265 = vector.broadcast %cst_108 : f32 to vector<8x8xf32>
    %266 = arith.cmpf ogt, %55, %265 : vector<8x8xf32>
    %cst_109 = arith.constant 2.000000e+01 : f32
    %267 = vector.broadcast %cst_109 : f32 to vector<8x8xf32>
    %268 = arith.minimumf %55, %267 : vector<8x8xf32>
    %269 = math.exp %268 : vector<8x8xf32>
    %cst_110 = arith.constant 1.000000e+00 : f32
    %270 = vector.broadcast %cst_110 : f32 to vector<8x8xf32>
    %271 = arith.addf %270, %269 : vector<8x8xf32>
    %272 = math.log %271 : vector<8x8xf32>
    %273 = arith.select %266, %55, %272 : vector<8x8xi1>, vector<8x8xf32>
    %cst_111 = arith.constant 1.000000e-03 : f32
    %274 = vector.broadcast %cst_111 : f32 to vector<8x8xf32>
    %275 = arith.addf %274, %273 : vector<8x8xf32>
    %cst_112 = arith.constant 2.000000e+01 : f32
    %276 = vector.broadcast %cst_112 : f32 to vector<8x8xf32>
    %277 = arith.cmpf ogt, %56, %276 : vector<8x8xf32>
    %cst_113 = arith.constant 2.000000e+01 : f32
    %278 = vector.broadcast %cst_113 : f32 to vector<8x8xf32>
    %279 = arith.minimumf %56, %278 : vector<8x8xf32>
    %280 = math.exp %279 : vector<8x8xf32>
    %cst_114 = arith.constant 1.000000e+00 : f32
    %281 = vector.broadcast %cst_114 : f32 to vector<8x8xf32>
    %282 = arith.addf %281, %280 : vector<8x8xf32>
    %283 = math.log %282 : vector<8x8xf32>
    %284 = arith.select %277, %56, %283 : vector<8x8xi1>, vector<8x8xf32>
    %cst_115 = arith.constant 1.000000e-03 : f32
    %285 = vector.broadcast %cst_115 : f32 to vector<8x8xf32>
    %286 = arith.addf %285, %284 : vector<8x8xf32>
    %c0_116 = arith.constant 0 : index
    %c0_117 = arith.constant 0 : index
    %287 = vector.load %arg2[%c0_116, %c0_117] : memref<8x8xf32, #tpu.memory_space<vmem>>, vector<8x8xf32>
    %cst_118 = arith.constant 0.000000e+00 : f32
    %288 = vector.broadcast %cst_118 : f32 to vector<8x8xf32>
    %cst_119 = arith.constant 1.000000e-03 : f32
    %289 = vector.broadcast %cst_119 : f32 to vector<8x8xf32>
    %290 = arith.addf %288, %92 : vector<8x8xf32>
    %291 = arith.addf %288, %163 : vector<8x8xf32>
    %292 = arith.cmpf ole, %287, %290 : vector<8x8xf32>
    %293 = arith.select %292, %288, %288 : vector<8x8xi1>, vector<8x8xf32>
    %294 = arith.select %292, %288, %288 : vector<8x8xi1>, vector<8x8xf32>
    %295 = arith.select %292, %92, %288 : vector<8x8xi1>, vector<8x8xf32>
    %296 = arith.select %292, %163, %288 : vector<8x8xi1>, vector<8x8xf32>
    %297 = arith.select %292, %209, %288 : vector<8x8xi1>, vector<8x8xf32>
    %298 = arith.select %292, %220, %288 : vector<8x8xi1>, vector<8x8xf32>
    %299 = arith.addf %290, %97 : vector<8x8xf32>
    %300 = arith.addf %291, %168 : vector<8x8xf32>
    %301 = arith.cmpf ogt, %287, %290 : vector<8x8xf32>
    %302 = arith.cmpf ole, %287, %299 : vector<8x8xf32>
    %303 = arith.andi %301, %302 : vector<8x8xi1>
    %304 = arith.select %303, %290, %293 : vector<8x8xi1>, vector<8x8xf32>
    %305 = arith.select %303, %291, %294 : vector<8x8xi1>, vector<8x8xf32>
    %306 = arith.select %303, %97, %295 : vector<8x8xi1>, vector<8x8xf32>
    %307 = arith.select %303, %168, %296 : vector<8x8xi1>, vector<8x8xf32>
    %308 = arith.select %303, %220, %297 : vector<8x8xi1>, vector<8x8xf32>
    %309 = arith.select %303, %231, %298 : vector<8x8xi1>, vector<8x8xf32>
    %310 = arith.addf %299, %102 : vector<8x8xf32>
    %311 = arith.addf %300, %173 : vector<8x8xf32>
    %312 = arith.cmpf ogt, %287, %299 : vector<8x8xf32>
    %313 = arith.cmpf ole, %287, %310 : vector<8x8xf32>
    %314 = arith.andi %312, %313 : vector<8x8xi1>
    %315 = arith.select %314, %299, %304 : vector<8x8xi1>, vector<8x8xf32>
    %316 = arith.select %314, %300, %305 : vector<8x8xi1>, vector<8x8xf32>
    %317 = arith.select %314, %102, %306 : vector<8x8xi1>, vector<8x8xf32>
    %318 = arith.select %314, %173, %307 : vector<8x8xi1>, vector<8x8xf32>
    %319 = arith.select %314, %231, %308 : vector<8x8xi1>, vector<8x8xf32>
    %320 = arith.select %314, %242, %309 : vector<8x8xi1>, vector<8x8xf32>
    %321 = arith.addf %310, %107 : vector<8x8xf32>
    %322 = arith.addf %311, %178 : vector<8x8xf32>
    %323 = arith.cmpf ogt, %287, %310 : vector<8x8xf32>
    %324 = arith.cmpf ole, %287, %321 : vector<8x8xf32>
    %325 = arith.andi %323, %324 : vector<8x8xi1>
    %326 = arith.select %325, %310, %315 : vector<8x8xi1>, vector<8x8xf32>
    %327 = arith.select %325, %311, %316 : vector<8x8xi1>, vector<8x8xf32>
    %328 = arith.select %325, %107, %317 : vector<8x8xi1>, vector<8x8xf32>
    %329 = arith.select %325, %178, %318 : vector<8x8xi1>, vector<8x8xf32>
    %330 = arith.select %325, %242, %319 : vector<8x8xi1>, vector<8x8xf32>
    %331 = arith.select %325, %253, %320 : vector<8x8xi1>, vector<8x8xf32>
    %332 = arith.addf %321, %112 : vector<8x8xf32>
    %333 = arith.addf %322, %183 : vector<8x8xf32>
    %334 = arith.cmpf ogt, %287, %321 : vector<8x8xf32>
    %335 = arith.cmpf ole, %287, %332 : vector<8x8xf32>
    %336 = arith.andi %334, %335 : vector<8x8xi1>
    %337 = arith.select %336, %321, %326 : vector<8x8xi1>, vector<8x8xf32>
    %338 = arith.select %336, %322, %327 : vector<8x8xi1>, vector<8x8xf32>
    %339 = arith.select %336, %112, %328 : vector<8x8xi1>, vector<8x8xf32>
    %340 = arith.select %336, %183, %329 : vector<8x8xi1>, vector<8x8xf32>
    %341 = arith.select %336, %253, %330 : vector<8x8xi1>, vector<8x8xf32>
    %342 = arith.select %336, %264, %331 : vector<8x8xi1>, vector<8x8xf32>
    %343 = arith.addf %332, %117 : vector<8x8xf32>
    %344 = arith.addf %333, %188 : vector<8x8xf32>
    %345 = arith.cmpf ogt, %287, %332 : vector<8x8xf32>
    %346 = arith.cmpf ole, %287, %343 : vector<8x8xf32>
    %347 = arith.andi %345, %346 : vector<8x8xi1>
    %348 = arith.select %347, %332, %337 : vector<8x8xi1>, vector<8x8xf32>
    %349 = arith.select %347, %333, %338 : vector<8x8xi1>, vector<8x8xf32>
    %350 = arith.select %347, %117, %339 : vector<8x8xi1>, vector<8x8xf32>
    %351 = arith.select %347, %188, %340 : vector<8x8xi1>, vector<8x8xf32>
    %352 = arith.select %347, %264, %341 : vector<8x8xi1>, vector<8x8xf32>
    %353 = arith.select %347, %275, %342 : vector<8x8xi1>, vector<8x8xf32>
    %354 = arith.addf %343, %122 : vector<8x8xf32>
    %355 = arith.addf %344, %193 : vector<8x8xf32>
    %356 = arith.cmpf ogt, %287, %343 : vector<8x8xf32>
    %357 = arith.cmpf ole, %287, %354 : vector<8x8xf32>
    %358 = arith.andi %356, %357 : vector<8x8xi1>
    %359 = arith.select %358, %343, %348 : vector<8x8xi1>, vector<8x8xf32>
    %360 = arith.select %358, %344, %349 : vector<8x8xi1>, vector<8x8xf32>
    %361 = arith.select %358, %122, %350 : vector<8x8xi1>, vector<8x8xf32>
    %362 = arith.select %358, %193, %351 : vector<8x8xi1>, vector<8x8xf32>
    %363 = arith.select %358, %275, %352 : vector<8x8xi1>, vector<8x8xf32>
    %364 = arith.select %358, %286, %353 : vector<8x8xi1>, vector<8x8xf32>
    %365 = arith.cmpf ogt, %287, %354 : vector<8x8xf32>
    %366 = arith.select %365, %354, %359 : vector<8x8xi1>, vector<8x8xf32>
    %367 = arith.select %365, %355, %360 : vector<8x8xi1>, vector<8x8xf32>
    %368 = arith.select %365, %127, %361 : vector<8x8xi1>, vector<8x8xf32>
    %369 = arith.select %365, %198, %362 : vector<8x8xi1>, vector<8x8xf32>
    %370 = arith.select %365, %286, %363 : vector<8x8xi1>, vector<8x8xf32>
    %371 = arith.select %365, %289, %364 : vector<8x8xi1>, vector<8x8xf32>
    %372 = arith.subf %287, %366 : vector<8x8xf32>
    %373 = tpu.reciprocal %368 {approx = true} : vector<8x8xf32> -> vector<8x8xf32>
    %374 = arith.mulf %372, %373 : vector<8x8xf32>
    %cst_120 = arith.constant 0.000000e+00 : f32
    %cst_121 = arith.constant 1.000000e+00 : f32
    %375 = vector.broadcast %cst_120 : f32 to vector<8x8xf32>
    %376 = arith.maximumf %375, %374 : vector<8x8xf32>
    %377 = vector.broadcast %cst_121 : f32 to vector<8x8xf32>
    %378 = arith.minimumf %377, %376 : vector<8x8xf32>
    %cst_122 = arith.constant 1.000000e+00 : f32
    %379 = vector.broadcast %cst_122 : f32 to vector<8x8xf32>
    %380 = arith.subf %379, %378 : vector<8x8xf32>
    %381 = arith.mulf %370, %378 : vector<8x8xf32>
    %382 = arith.mulf %381, %378 : vector<8x8xf32>
    %cst_123 = arith.constant 2.000000e+00 : f32
    %383 = vector.broadcast %cst_123 : f32 to vector<8x8xf32>
    %384 = arith.mulf %383, %378 : vector<8x8xf32>
    %385 = arith.mulf %384, %380 : vector<8x8xf32>
    %386 = arith.addf %382, %385 : vector<8x8xf32>
    %387 = arith.mulf %369, %386 : vector<8x8xf32>
    %388 = arith.subf %371, %370 : vector<8x8xf32>
    %389 = arith.mulf %388, %378 : vector<8x8xf32>
    %390 = arith.addf %370, %389 : vector<8x8xf32>
    %391 = tpu.reciprocal %390 {approx = true} : vector<8x8xf32> -> vector<8x8xf32>
    %392 = arith.mulf %387, %391 : vector<8x8xf32>
    %393 = arith.addf %367, %392 : vector<8x8xf32>
    %c0_124 = arith.constant 0 : index
    %c0_125 = arith.constant 0 : index
    %394 = vector.load %arg13[%c0_124, %c0_125] : memref<8x8xf32, #tpu.memory_space<vmem>>, vector<8x8xf32>
    tpu.vector_store %arg13[%c0_124, %c0_125], %393 {strides = array<i32>} : memref<8x8xf32, #tpu.memory_space<vmem>>, vector<8x8xf32>,
    %cst_126 = arith.constant 2.000000e+00 : f32
    %395 = vector.broadcast %cst_126 : f32 to vector<8x8xf32>
    %396 = arith.mulf %395, %378 : vector<8x8xf32>
    %397 = arith.mulf %396, %380 : vector<8x8xf32>
    %398 = arith.mulf %397, %371 : vector<8x8xf32>
    %399 = arith.addf %398, %370 : vector<8x8xf32>
    %400 = arith.mulf %369, %399 : vector<8x8xf32>
    %401 = arith.mulf %400, %399 : vector<8x8xf32>
    %402 = arith.mulf %401, %391 : vector<8x8xf32>
    %403 = math.log %402 : vector<8x8xf32>
    %cst_127 = arith.constant dense<0.000000e+00> : vector<8xf32>
    %404 = vector.multi_reduction <add>, %403, %cst_127 [1] : vector<8x8xf32> to vector<8xf32>
    %405 = vector.shape_cast %404 : vector<8xf32> to vector<8x1xf32>
    %c0_128 = arith.constant 0 : index
    %c0_129 = arith.constant 0 : index
    %406 = vector.load %arg14[%c0_128, %c0_129] : memref<8x1xf32, #tpu.memory_space<vmem>>, vector<8x1xf32>
    tpu.vector_store %arg14[%c0_128, %c0_129], %405 {strides = array<i32>} : memref<8x1xf32, #tpu.memory_space<vmem>>, vector<8x1xf32>,
    return
  }
  func.func @transform_0(%arg0: i32) -> (i32, i32) {
    %c0_i32 = arith.constant 0 : i32
    %c0_i32_0 = arith.constant 0 : i32
    return %arg0, %c0_i32 : i32, i32
  }
  func.func @transform_1(%arg0: i32) -> (i32, i32) {
    %c0_i32 = arith.constant 0 : i32
    %c0_i32_0 = arith.constant 0 : i32
    return %arg0, %c0_i32 : i32, i32
  }
  func.func @transform_2(%arg0: i32) -> (i32, i32) {
    %c0_i32 = arith.constant 0 : i32
    %c0_i32_0 = arith.constant 0 : i32
    %c0_i32_1 = arith.constant 0 : i32
    return %c0_i32, %c0_i32_0 : i32, i32
  }
  func.func @transform_3(%arg0: i32) -> (i32, i32) {
    %c0_i32 = arith.constant 0 : i32
    %c0_i32_0 = arith.constant 0 : i32
    %c0_i32_1 = arith.constant 0 : i32
    return %c0_i32, %c0_i32_0 : i32, i32
  }
  func.func @transform_4(%arg0: i32) -> (i32, i32) {
    %c0_i32 = arith.constant 0 : i32
    %c0_i32_0 = arith.constant 0 : i32
    %c0_i32_1 = arith.constant 0 : i32
    return %c0_i32, %c0_i32_0 : i32, i32
  }
  func.func @transform_5(%arg0: i32) -> (i32, i32) {
    %c0_i32 = arith.constant 0 : i32
    %c0_i32_0 = arith.constant 0 : i32
    %c0_i32_1 = arith.constant 0 : i32
    return %c0_i32, %c0_i32_0 : i32, i32
  }
  func.func @transform_6(%arg0: i32) -> (i32, i32) {
    %c0_i32 = arith.constant 0 : i32
    %c0_i32_0 = arith.constant 0 : i32
    %c0_i32_1 = arith.constant 0 : i32
    return %c0_i32, %c0_i32_0 : i32, i32
  }
  func.func @transform_7(%arg0: i32) -> (i32, i32) {
    %c0_i32 = arith.constant 0 : i32
    %c0_i32_0 = arith.constant 0 : i32
    %c0_i32_1 = arith.constant 0 : i32
    return %c0_i32, %c0_i32_0 : i32, i32
  }
  func.func @transform_8(%arg0: i32) -> (i32, i32) {
    %c0_i32 = arith.constant 0 : i32
    %c0_i32_0 = arith.constant 0 : i32
    %c0_i32_1 = arith.constant 0 : i32
    return %c0_i32, %c0_i32_0 : i32, i32
  }
  func.func @transform_9(%arg0: i32) -> (i32, i32) {
    %c0_i32 = arith.constant 0 : i32
    %c0_i32_0 = arith.constant 0 : i32
    %c0_i32_1 = arith.constant 0 : i32
    return %c0_i32, %c0_i32_0 : i32, i32
  }
  func.func @transform_10(%arg0: i32) -> (i32, i32) {
    %c0_i32 = arith.constant 0 : i32
    %c0_i32_0 = arith.constant 0 : i32
    %c0_i32_1 = arith.constant 0 : i32
    return %c0_i32, %c0_i32_0 : i32, i32
  }
  func.func @transform_11(%arg0: i32) -> (i32, i32) {
    %c0_i32 = arith.constant 0 : i32
    %c0_i32_0 = arith.constant 0 : i32
    %c0_i32_1 = arith.constant 0 : i32
    return %c0_i32, %c0_i32_0 : i32, i32
  }
  func.func @transform_12(%arg0: i32) -> (i32, i32) {
    %c0_i32 = arith.constant 0 : i32
    %c0_i32_0 = arith.constant 0 : i32
    return %arg0, %c0_i32 : i32, i32
  }
  func.func @transform_13(%arg0: i32) -> (i32, i32) {
    %c0_i32 = arith.constant 0 : i32
    %c0_i32_0 = arith.constant 0 : i32
    return %arg0, %c0_i32 : i32, i32
  }
}

</mosaic_0001>

<llo_original>
// kernel: coupling_forward.1
$region0: #{coupling_forward.1}
  #allocation0 [shape = 'u32[]', space=smem, size = 0x4, offset = 0x4, fixed_abs, tag = 'smem constant byte address 0x4 - core index']
  #allocation1 [shape = 'u32[144,128]{1,0:T(1,128)}', space=vmem, size = 0x12000, scoped, tag = 'internal scratch']
  #allocation2 [shape = 'f32[8,192]{1,0:T(8,128)}', space=vmem, size = 0x2000, scoped, tag = 'scratch operand']
  %s0 = inlined_call_operand.vmem [shape: f32[8,8], index: 0, kind: input, shape index: {}]
  %s1 = inlined_call_operand.vmem [shape: f32[8,8], index: 1, kind: input, shape index: {}]
  %s2 = inlined_call_operand.vmem [shape: f32[8,32], index: 2, kind: input, shape index: {}]
  %s3 = inlined_call_operand.vmem [shape: f32[1,32], index: 3, kind: input, shape index: {}]
  %s4 = inlined_call_operand.vmem [shape: f32[1,32], index: 4, kind: input, shape index: {}]
  %s5 = inlined_call_operand.vmem [shape: f32[1,32], index: 5, kind: input, shape index: {}]
  %s6 = inlined_call_operand.vmem [shape: f32[32,32], index: 6, kind: input, shape index: {}]
  %s7 = inlined_call_operand.vmem [shape: f32[1,32], index: 7, kind: input, shape index: {}]
  %s8 = inlined_call_operand.vmem [shape: f32[1,32], index: 8, kind: input, shape index: {}]
  %s9 = inlined_call_operand.vmem [shape: f32[1,32], index: 9, kind: input, shape index: {}]
  %s10 = inlined_call_operand.vmem [shape: f32[32,192], index: 10, kind: input, shape index: {}]
  %s11 = inlined_call_operand.vmem [shape: f32[1,192], index: 11, kind: input, shape index: {}]
  %s12 = inlined_call_operand.vmem [shape: f32[8,8], index: 12, kind: output, shape index: {0}]
  %s13 = inlined_call_operand.vmem [shape: f32[8,1], index: 13, kind: output, shape index: {1}]
  %14 = xla_tuple %s12, %s13
  %s15 = sld [smem:[#allocation0]]
  $region66: #{coupling_forward.1} parent=0
    _
  %s17 = ssub.s32 1, %s15
  %s18 = scalar_select 0, %s17, %s15
  // Predicated region
  $region2: #{coupling_forward.1} parent=0 // pred_check
    _
  $region3: #{coupling_forward.1} parent=0 // pred_check_branch
    %20 = sbr.rel (0) target = $region5
  $region4: #{coupling_forward.1} parent=0 // pred_region
    _
  $region5: #{coupling_forward.1} parent=0 // pred_fallthru
    _
  // Predicated region
  $region6: #{coupling_forward.1} parent=0 // pred_check
    _
  $region7: #{coupling_forward.1} parent=0 // pred_check_branch
    %22 = sbr.rel (0) target = $region9
  $region8: #{coupling_forward.1} parent=0 // pred_region
    _
  $region9: #{coupling_forward.1} parent=0 // pred_fallthru
    _
  // Predicated region
  $region10: #{coupling_forward.1} parent=0 // pred_check
    _
  $region11: #{coupling_forward.1} parent=0 // pred_check_branch
    %24 = sbr.rel (0) target = $region13
  $region12: #{coupling_forward.1} parent=0 // pred_region
    _
  $region13: #{coupling_forward.1} parent=0 // pred_fallthru
    _
  // Predicated region
  $region14: #{coupling_forward.1} parent=0 // pred_check
    _
  $region15: #{coupling_forward.1} parent=0 // pred_check_branch
    %26 = sbr.rel (0) target = $region17
  $region16: #{coupling_forward.1} parent=0 // pred_region
    _
  $region17: #{coupling_forward.1} parent=0 // pred_fallthru
    _
  // Predicated region
  $region18: #{coupling_forward.1} parent=0 // pred_check
    _
  $region19: #{coupling_forward.1} parent=0 // pred_check_branch
    %28 = sbr.rel (0) target = $region21
  $region20: #{coupling_forward.1} parent=0 // pred_region
    _
  $region21: #{coupling_forward.1} parent=0 // pred_fallthru
    _
  // Predicated region
  $region22: #{coupling_forward.1} parent=0 // pred_check
    _
  $region23: #{coupling_forward.1} parent=0 // pred_check_branch
    %30 = sbr.rel (0) target = $region25
  $region24: #{coupling_forward.1} parent=0 // pred_region
    _
  $region25: #{coupling_forward.1} parent=0 // pred_fallthru
    _
  // Predicated region
  $region26: #{coupling_forward.1} parent=0 // pred_check
    _
  $region27: #{coupling_forward.1} parent=0 // pred_check_branch
    %32 = sbr.rel (0) target = $region29
  $region28: #{coupling_forward.1} parent=0 // pred_region
    _
  $region29: #{coupling_forward.1} parent=0 // pred_fallthru
    _
  // Predicated region
  $region30: #{coupling_forward.1} parent=0 // pred_check
    _
  $region31: #{coupling_forward.1} parent=0 // pred_check_branch
    %34 = sbr.rel (0) target = $region33
  $region32: #{coupling_forward.1} parent=0 // pred_region
    _
  $region33: #{coupling_forward.1} parent=0 // pred_fallthru
    _
  // Predicated region
  $region34: #{coupling_forward.1} parent=0 // pred_check
    _
  $region35: #{coupling_forward.1} parent=0 // pred_check_branch
    %36 = sbr.rel (0) target = $region37
  $region36: #{coupling_forward.1} parent=0 // pred_region
    _
  $region37: #{coupling_forward.1} parent=0 // pred_fallthru
    _
  // Predicated region
  $region38: #{coupling_forward.1} parent=0 // pred_check
    _
  $region39: #{coupling_forward.1} parent=0 // pred_check_branch
    %38 = sbr.rel (0) target = $region41
  $region40: #{coupling_forward.1} parent=0 // pred_region
    _
  $region41: #{coupling_forward.1} parent=0 // pred_fallthru
    _
  // Predicated region
  $region42: #{coupling_forward.1} parent=0 // pred_check
    _
  $region43: #{coupling_forward.1} parent=0 // pred_check_branch
    %40 = sbr.rel (0) target = $region45
  $region44: #{coupling_forward.1} parent=0 // pred_region
    _
  $region45: #{coupling_forward.1} parent=0 // pred_fallthru
    _
  // Predicated region
  $region46: #{coupling_forward.1} parent=0 // pred_check
    _
  $region47: #{coupling_forward.1} parent=0 // pred_check_branch
    %42 = sbr.rel (0) target = $region49
  $region48: #{coupling_forward.1} parent=0 // pred_region
    _
  $region49: #{coupling_forward.1} parent=0 // pred_fallthru
    _
  %v43 = vld [vmem:[%s0] sm:$0xff]
  %v44 = vld [vmem:[%s2] sm:$0xff]
  %v45 = vld [vmem:[%s3] sm:$0x1]
  %v47 = vlaneseq
  %v48 = vshrl.u32 %v47, 7
  %v49 = vsub.s32 0, %v48
  %v50 = vrot.slane %v45, %v49
  %vm52 = vcmask 64512
  %v54 = vsel %vm52, %v43, 0
  %56 = vmatprep.subr.mxu0 0.0
  %57 = vmatpush1.msra.mxu0 %v44
  %58 = vmatprep.subr.mxu0 0.0
  %59 = vmatpush1.msra.mxu0 0.0
  %60 = vmatprep.subr.mxu0 0.0
  %61 = vmatpush1.msra.mxu0 0.0
  %62 = vmatprep.subr.mxu0 0.0
  %63 = vmatpush1.msra.mxu0 0.0
  %64 = vmatprep.subr.mxu0 0.0
  %65 = vmatpush1.msra.mxu0 0.0
  %66 = vmatprep.subr.mxu0 0.0
  %67 = vmatpush1.msra.mxu0 0.0
  %68 = vmatprep.subr.mxu0 0.0
  %69 = vmatpush1.msra.mxu0 0.0
  %70 = vmatprep.subr.mxu0 0.0
  %71 = vmatpush1.msra.mxu0 0.0
  %72 = vmatprep.subr.mxu0 0.0
  %73 = vmatpush1.msra.mxu0 0.0
  %74 = vmatprep.subr.mxu0 0.0
  %75 = vmatpush1.msra.mxu0 0.0
  %76 = vmatprep.subr.mxu0 0.0
  %77 = vmatpush1.msra.mxu0 0.0
  %78 = vmatprep.subr.mxu0 0.0
  %79 = vmatpush1.msra.mxu0 0.0
  %80 = vmatprep.subr.mxu0 0.0
  %81 = vmatpush1.msra.mxu0 0.0
  %82 = vmatprep.subr.mxu0 0.0
  %83 = vmatpush1.msra.mxu0 0.0
  %84 = vmatprep.subr.mxu0 0.0
  %85 = vmatpush1.msra.mxu0 0.0
  %86 = vmatprep.subr.mxu0 0.0
  %87 = vmatpush1.msra.mxu0 0.0
  %88 = vmatprep.subr.mxu0 0.0
  %89 = vmatpush1.msra.mxu0 0.0
  %90 = vmatprep.subr.mxu0 0.0
  %91 = vmatpush1.msra.mxu0 0.0
  %92 = vmatprep.subr.mxu0 0.0
  %93 = vmatpush1.msra.mxu0 0.0
  %94 = vmatprep.subr.mxu0 0.0
  %95 = vmatpush1.msra.mxu0 0.0
  %96 = vmatprep.subr.mxu0 0.0
  %97 = vmatpush1.msra.mxu0 0.0
  %98 = vmatprep.subr.mxu0 0.0
  %99 = vmatpush1.msra.mxu0 0.0
  %100 = vmatprep.subr.mxu0 0.0
  %101 = vmatpush1.msra.mxu0 0.0
  %102 = vmatprep.subr.mxu0 0.0
  %103 = vmatpush1.msra.mxu0 0.0
  %104 = vmatprep.subr.mxu0 0.0
  %105 = vmatpush1.msra.mxu0 0.0
  %106 = vmatprep.subr.mxu0 0.0
  %107 = vmatpush1.msra.mxu0 0.0
  %108 = vmatprep.subr.mxu0 0.0
  %109 = vmatpush1.msra.mxu0 0.0
  %110 = vmatprep.subr.mxu0 0.0
  %111 = vmatpush1.msra.mxu0 0.0
  %112 = vmatprep.subr.mxu0 0.0
  %113 = vmatpush1.msra.mxu0 0.0
  %114 = vmatprep.subr.mxu0 0.0
  %115 = vmatpush1.msra.mxu0 0.0
  %116 = vmatprep.subr.mxu0 0.0
  %117 = vmatpush1.msra.mxu0 0.0
  %118 = vmatprep.subr.mxu0 0.0
  %119 = vmatpush1.msra.mxu0 0.0
  %120 = vmatprep.mubr.f32.mxu0 0.0
  %121 = vmatmul.mubr.f32.gmra.mrb[0].mxu0 %v54
  %v122 = vpop.f32.mrb[0].mxu0
  %v123 = vadd.f32 %v50, %v122
  %v124 = vpop.f32.mrb[0].mxu0
  %125 = vdwg.mxu0
  %v126 = vmax.f32 %v123, 0.0
  %v127 = vld [vmem:[%s4] sm:$0x1]
  %v129 = vlaneseq
  %v130 = vshrl.u32 %v129, 7
  %v131 = vsub.s32 0, %v130
  %v132 = vrot.slane %v127, %v131
  %v134 = vmul.f32 %v126, %v132
  %v135 = vld [vmem:[%s5] sm:$0x1]
  %v137 = vlaneseq
  %v138 = vshrl.u32 %v137, 7
  %v139 = vsub.s32 0, %v138
  %v140 = vrot.slane %v135, %v139
  %v142 = vadd.f32 %v134, %v140
  %v143 = vld [vmem:[%s6] sm:$0xff]
  %v144 = vld [vmem:[%s6 + $0x8] sm:$0xff]
  %v145 = vld [vmem:[%s6 + $0x10] sm:$0xff]
  %v146 = vld [vmem:[%s6 + $0x18] sm:$0xff]
  %v147 = vld [vmem:[%s7] sm:$0x1]
  %v149 = vlaneseq
  %v150 = vshrl.u32 %v149, 7
  %v151 = vsub.s32 0, %v150
  %v152 = vrot.slane %v147, %v151
  %vm154 = vcmask 261120
  %v156 = vsel %vm154, %v142, 0
  %158 = vmatprep.subr.mxu0 0.0
  %159 = vmatpush1.msra.mxu0 %v143
  %160 = vmatprep.subr.mxu0 0.0
  %161 = vmatpush1.msra.mxu0 %v144
  %162 = vmatprep.subr.mxu0 0.0
  %163 = vmatpush1.msra.mxu0 %v145
  %164 = vmatprep.subr.mxu0 0.0
  %165 = vmatpush1.msra.mxu0 %v146
  %166 = vmatprep.subr.mxu0 0.0
  %167 = vmatpush1.msra.mxu0 0.0
  %168 = vmatprep.subr.mxu0 0.0
  %169 = vmatpush1.msra.mxu0 0.0
  %170 = vmatprep.subr.mxu0 0.0
  %171 = vmatpush1.msra.mxu0 0.0
  %172 = vmatprep.subr.mxu0 0.0
  %173 = vmatpush1.msra.mxu0 0.0
  %174 = vmatprep.subr.mxu0 0.0
  %175 = vmatpush1.msra.mxu0 0.0
  %176 = vmatprep.subr.mxu0 0.0
  %177 = vmatpush1.msra.mxu0 0.0
  %178 = vmatprep.subr.mxu0 0.0
  %179 = vmatpush1.msra.mxu0 0.0
  %180 = vmatprep.subr.mxu0 0.0
  %181 = vmatpush1.msra.mxu0 0.0
  %182 = vmatprep.subr.mxu0 0.0
  %183 = vmatpush1.msra.mxu0 0.0
  %184 = vmatprep.subr.mxu0 0.0
  %185 = vmatpush1.msra.mxu0 0.0
  %186 = vmatprep.subr.mxu0 0.0
  %187 = vmatpush1.msra.mxu0 0.0
  %188 = vmatprep.subr.mxu0 0.0
  %189 = vmatpush1.msra.mxu0 0.0
  %190 = vmatprep.subr.mxu0 0.0
  %191 = vmatpush1.msra.mxu0 0.0
  %192 = vmatprep.subr.mxu0 0.0
  %193 = vmatpush1.msra.mxu0 0.0
  %194 = vmatprep.subr.mxu0 0.0
  %195 = vmatpush1.msra.mxu0 0.0
  %196 = vmatprep.subr.mxu0 0.0
  %197 = vmatpush1.msra.mxu0 0.0
  %198 = vmatprep.subr.mxu0 0.0
  %199 = vmatpush1.msra.mxu0 0.0
  %200 = vmatprep.subr.mxu0 0.0
  %201 = vmatpush1.msra.mxu0 0.0
  %202 = vmatprep.subr.mxu0 0.0
  %203 = vmatpush1.msra.mxu0 0.0
  %204 = vmatprep.subr.mxu0 0.0
  %205 = vmatpush1.msra.mxu0 0.0
  %206 = vmatprep.subr.mxu0 0.0
  %207 = vmatpush1.msra.mxu0 0.0
  %208 = vmatprep.subr.mxu0 0.0
  %209 = vmatpush1.msra.mxu0 0.0
  %210 = vmatprep.subr.mxu0 0.0
  %211 = vmatpush1.msra.mxu0 0.0
  %212 = vmatprep.subr.mxu0 0.0
  %213 = vmatpush1.msra.mxu0 0.0
  %214 = vmatprep.subr.mxu0 0.0
  %215 = vmatpush1.msra.mxu0 0.0
  %216 = vmatprep.subr.mxu0 0.0
  %217 = vmatpush1.msra.mxu0 0.0
  %218 = vmatprep.subr.mxu0 0.0
  %219 = vmatpush1.msra.mxu0 0.0
  %220 = vmatprep.subr.mxu0 0.0
  %221 = vmatpush1.msra.mxu0 0.0
  %222 = vmatprep.mubr.f32.mxu0 0.0
  %223 = vmatmul.mubr.f32.gmra.mrb[0].mxu0 %v156
  %v224 = vpop.f32.mrb[0].mxu0
  %v225 = vadd.f32 %v152, %v224
  %v226 = vpop.f32.mrb[0].mxu0
  %227 = vdwg.mxu0
  %v228 = vmax.f32 %v225, 0.0
  %v229 = vld [vmem:[%s8] sm:$0x1]
  %v231 = vlaneseq
  %v232 = vshrl.u32 %v231, 7
  %v233 = vsub.s32 0, %v232
  %v234 = vrot.slane %v229, %v233
  %v236 = vmul.f32 %v228, %v234
  %v237 = vld [vmem:[%s9] sm:$0x1]
  %v239 = vlaneseq
  %v240 = vshrl.u32 %v239, 7
  %v241 = vsub.s32 0, %v240
  %v242 = vrot.slane %v237, %v241
  %v244 = vadd.f32 %v236, %v242
  %v245 = vld [vmem:[%s10] sm:$0xff]
  %v246 = vld [vmem:[%s10 + $0x8] sm:$0xff]
  %v247 = vld [vmem:[%s10 + $0x10] sm:$0xff]
  %v248 = vld [vmem:[%s10 + $0x18] sm:$0xff]
  %v249 = vld [vmem:[%s10 + $0x20] sm:$0xff]
  %v250 = vld [vmem:[%s10 + $0x28] sm:$0xff]
  %v251 = vld [vmem:[%s10 + $0x30] sm:$0xff]
  %v252 = vld [vmem:[%s10 + $0x38] sm:$0xff]
  %v253 = vld [vmem:[%s11] sm:$0x3]
  %v255 = vlaneseq
  %v256 = vshrl.u32 %v255, 7
  %v257 = vsub.s32 0, %v256
  %v258 = vrot.slane %v253, %v257
  %v259 = vlaneseq
  %v260 = vshrl.u32 %v259, 7
  %v261 = vsub.s32 1, %v260
  %v262 = vrot.slane %v253, %v261
  %v266 = vsel %vm154, %v244, 0
  %268 = vmatprep.subr.mxu0 %v246
  %269 = vmatpush1.msra.mxu0 %v245
  %270 = vmatprep.subr.mxu0 %v248
  %271 = vmatpush1.msra.mxu0 %v247
  %272 = vmatprep.subr.mxu0 %v250
  %273 = vmatpush1.msra.mxu0 %v249
  %274 = vmatprep.subr.mxu0 %v252
  %275 = vmatpush1.msra.mxu0 %v251
  %276 = vmatprep.subr.mxu0 0.0
  %277 = vmatpush1.msra.mxu0 0.0
  %278 = vmatprep.subr.mxu0 0.0
  %279 = vmatpush1.msra.mxu0 0.0
  %280 = vmatprep.subr.mxu0 0.0
  %281 = vmatpush1.msra.mxu0 0.0
  %282 = vmatprep.subr.mxu0 0.0
  %283 = vmatpush1.msra.mxu0 0.0
  %284 = vmatprep.subr.mxu0 0.0
  %285 = vmatpush1.msra.mxu0 0.0
  %286 = vmatprep.subr.mxu0 0.0
  %287 = vmatpush1.msra.mxu0 0.0
  %288 = vmatprep.subr.mxu0 0.0
  %289 = vmatpush1.msra.mxu0 0.0
  %290 = vmatprep.subr.mxu0 0.0
  %291 = vmatpush1.msra.mxu0 0.0
  %292 = vmatprep.subr.mxu0 0.0
  %293 = vmatpush1.msra.mxu0 0.0
  %294 = vmatprep.subr.mxu0 0.0
  %295 = vmatpush1.msra.mxu0 0.0
  %296 = vmatprep.subr.mxu0 0.0
  %297 = vmatpush1.msra.mxu0 0.0
  %298 = vmatprep.subr.mxu0 0.0
  %299 = vmatpush1.msra.mxu0 0.0
  %300 = vmatprep.subr.mxu0 0.0
  %301 = vmatpush1.msra.mxu0 0.0
  %302 = vmatprep.subr.mxu0 0.0
  %303 = vmatpush1.msra.mxu0 0.0
  %304 = vmatprep.subr.mxu0 0.0
  %305 = vmatpush1.msra.mxu0 0.0
  %306 = vmatprep.subr.mxu0 0.0
  %307 = vmatpush1.msra.mxu0 0.0
  %308 = vmatprep.subr.mxu0 0.0
  %309 = vmatpush1.msra.mxu0 0.0
  %310 = vmatprep.subr.mxu0 0.0
  %311 = vmatpush1.msra.mxu0 0.0
  %312 = vmatprep.subr.mxu0 0.0
  %313 = vmatpush1.msra.mxu0 0.0
  %314 = vmatprep.subr.mxu0 0.0
  %315 = vmatpush1.msra.mxu0 0.0
  %316 = vmatprep.subr.mxu0 0.0
  %317 = vmatpush1.msra.mxu0 0.0
  %318 = vmatprep.subr.mxu0 0.0
  %319 = vmatpush1.msra.mxu0 0.0
  %320 = vmatprep.subr.mxu0 0.0
  %321 = vmatpush1.msra.mxu0 0.0
  %322 = vmatprep.subr.mxu0 0.0
  %323 = vmatpush1.msra.mxu0 0.0
  %324 = vmatprep.subr.mxu0 0.0
  %325 = vmatpush1.msra.mxu0 0.0
  %326 = vmatprep.subr.mxu0 0.0
  %327 = vmatpush1.msra.mxu0 0.0
  %328 = vmatprep.subr.mxu0 0.0
  %329 = vmatpush1.msra.mxu0 0.0
  %330 = vmatprep.subr.mxu0 0.0
  %331 = vmatpush1.msra.mxu0 0.0
  %332 = vmatprep.mubr.f32.mxu0 0.0
  %333 = vmatmul.mubr.f32.gmra.mrb[0].mxu0 %v266
  %v334 = vpop.f32.mrb[0].mxu0
  %v335 = vadd.f32 %v258, %v334
  %v336 = vpop.f32.mrb[0].mxu0
  %v337 = vadd.f32 %v262, %v336
  %338 = vdwg.mxu0
  %339 = vst [vmem:[#allocation2] sm:$0xff] %v335
  %vm340 = vcmask 523264
  %341 = vst.msk [vmem:[#allocation2 + $0x8] sm:$0xff] %vm340, %v337
  %v342 = vld [vmem:[#allocation2] sm:$0xff]
  %v343 = vld [vmem:[#allocation2 + $0x8] sm:$0xff]
  %345 = vrot.lane.b32.xlu0 %v342, 120
  %v346 = vpop.permute.xlu0 %345
  %v348 = vmax.f32 %v342, %v346
  %349 = vrot.lane.b32.xlu0 %v342, 112
  %v350 = vpop.permute.xlu0 %349
  %v352 = vmax.f32 %v348, %v350
  %353 = vrot.lane.b32.xlu0 %v342, 104
  %v354 = vpop.permute.xlu0 %353
  %v356 = vmax.f32 %v352, %v354
  %357 = vrot.lane.b32.xlu0 %v342, 96
  %v358 = vpop.permute.xlu0 %357
  %v360 = vmax.f32 %v356, %v358
  %361 = vrot.lane.b32.xlu0 %v342, 88
  %v362 = vpop.permute.xlu0 %361
  %v364 = vmax.f32 %v360, %v362
  %365 = vrot.lane.b32.xlu0 %v342, 80
  %v366 = vpop.permute.xlu0 %365
  %v368 = vmax.f32 %v364, %v366
  %369 = vrot.lane.b32.xlu0 %v342, 72
  %v370 = vpop.permute.xlu0 %369
  %v372 = vmax.f32 %v368, %v370
  %v373 = vsub.f32 %v342, %v372
  %v374 = vmul.f32 %v373, 1.442695
  %v375 = vpow.pop %v374
  %377 = vrot.lane.b32.xlu0 %v372, 8
  %v378 = vpop.permute.xlu0 %377
  %v380 = vsub.f32 %v342, %v378
  %v381 = vmul.f32 %v380, 1.442695
  %v382 = vpow.pop %v381
  %383 = vrot.lane.b32.xlu0 %v372, 16
  %v384 = vpop.permute.xlu0 %383
  %v386 = vsub.f32 %v342, %v384
  %v387 = vmul.f32 %v386, 1.442695
  %v388 = vpow.pop %v387
  %389 = vrot.lane.b32.xlu0 %v372, 24
  %v390 = vpop.permute.xlu0 %389
  %v392 = vsub.f32 %v342, %v390
  %v393 = vmul.f32 %v392, 1.442695
  %v394 = vpow.pop %v393
  %395 = vrot.lane.b32.xlu0 %v372, 32
  %v396 = vpop.permute.xlu0 %395
  %v398 = vsub.f32 %v342, %v396
  %v399 = vmul.f32 %v398, 1.442695
  %v400 = vpow.pop %v399
  %401 = vrot.lane.b32.xlu0 %v372, 40
  %v402 = vpop.permute.xlu0 %401
  %v404 = vsub.f32 %v342, %v402
  %v405 = vmul.f32 %v404, 1.442695
  %v406 = vpow.pop %v405
  %407 = vrot.lane.b32.xlu0 %v372, 48
  %v408 = vpop.permute.xlu0 %407
  %v410 = vsub.f32 %v342, %v408
  %v411 = vmul.f32 %v410, 1.442695
  %v412 = vpow.pop %v411
  %413 = vrot.lane.b32.xlu0 %v372, 56
  %v414 = vpop.permute.xlu0 %413
  %v416 = vsub.f32 %v342, %v414
  %v417 = vmul.f32 %v416, 1.442695
  %v418 = vpow.pop %v417
  %420 = vrot.lane.b32.xlu0 %v382, 120
  %v421 = vpop.permute.xlu0 %420
  %v423 = vadd.f32 %v375, %v421
  %425 = vrot.lane.b32.xlu0 %v388, 112
  %v426 = vpop.permute.xlu0 %425
  %v428 = vadd.f32 %v423, %v426
  %430 = vrot.lane.b32.xlu0 %v394, 104
  %v431 = vpop.permute.xlu0 %430
  %v433 = vadd.f32 %v428, %v431
  %435 = vrot.lane.b32.xlu0 %v400, 96
  %v436 = vpop.permute.xlu0 %435
  %v438 = vadd.f32 %v433, %v436
  %440 = vrot.lane.b32.xlu0 %v406, 88
  %v441 = vpop.permute.xlu0 %440
  %v443 = vadd.f32 %v438, %v441
  %445 = vrot.lane.b32.xlu0 %v412, 80
  %v446 = vpop.permute.xlu0 %445
  %v448 = vadd.f32 %v443, %v446
  %450 = vrot.lane.b32.xlu0 %v418, 72
  %v451 = vpop.permute.xlu0 %450
  %v453 = vadd.f32 %v448, %v451
  %v454 = vrcp.pop %v453
  %v455 = vmul.f32 %v375, %v454
  %v456 = vmul.f32 %v455, 0.992
  %v457 = vadd.f32 %v456, 0.001
  %459 = vrot.lane.b32.xlu0 %v454, 8
  %v460 = vpop.permute.xlu0 %459
  %v462 = vmul.f32 %v382, %v460
  %v463 = vmul.f32 %v462, 0.992
  %v464 = vadd.f32 %v463, 0.001
  %465 = vrot.lane.b32.xlu0 %v454, 16
  %v466 = vpop.permute.xlu0 %465
  %v468 = vmul.f32 %v388, %v466
  %v469 = vmul.f32 %v468, 0.992
  %v470 = vadd.f32 %v469, 0.001
  %471 = vrot.lane.b32.xlu0 %v454, 24
  %v472 = vpop.permute.xlu0 %471
  %v474 = vmul.f32 %v394, %v472
  %v475 = vmul.f32 %v474, 0.992
  %v476 = vadd.f32 %v475, 0.001
  %477 = vrot.lane.b32.xlu0 %v454, 32
  %v478 = vpop.permute.xlu0 %477
  %v480 = vmul.f32 %v400, %v478
  %v481 = vmul.f32 %v480, 0.992
  %v482 = vadd.f32 %v481, 0.001
  %483 = vrot.lane.b32.xlu0 %v454, 40
  %v484 = vpop.permute.xlu0 %483
  %v486 = vmul.f32 %v406, %v484
  %v487 = vmul.f32 %v486, 0.992
  %v488 = vadd.f32 %v487, 0.001
  %489 = vrot.lane.b32.xlu0 %v454, 48
  %v490 = vpop.permute.xlu0 %489
  %v492 = vmul.f32 %v412, %v490
  %v493 = vmul.f32 %v492, 0.992
  %v494 = vadd.f32 %v493, 0.001
  %495 = vrot.lane.b32.xlu0 %v454, 56
  %v496 = vpop.permute.xlu0 %495
  %v498 = vmul.f32 %v418, %v496
  %v499 = vmul.f32 %v498, 0.992
  %v500 = vadd.f32 %v499, 0.001
  %vm501 = vcmp.gt.f32.partialorder %v343, 20.0
  %v502 = vmin.f32 %v343, 20.0
  %v503 = vmul.f32 %v502, 1.442695
  %v504 = vpow.pop %v503
  %v505 = vadd.f32 %v504, 1.0
  %v506 = vlog2.pop %v505
  %v507 = vmul.f32 %v506, 0.6931472
  %v508 = vsel %vm501, %v343, %v507
  %v509 = vadd.f32 %v508, 0.001
  %v510 = vld [vmem:[%s1] sm:$0xff]
  %v511 = vadd.f32 %v457, 0.0
  %vm512 = vcmp.le.f32.partialorder %v510, %v511
  %v513 = vsel %vm512, %v457, 0.0
  %515 = vrot.lane.b32.xlu0 %v457, 64
  %v516 = vpop.permute.xlu0 %515
  %v518 = vsel %vm512, %v516, 0.0
  %v519 = vsel %vm512, %v509, 0.0
  %521 = vrot.lane.b32.xlu0 %v509, 120
  %v522 = vpop.permute.xlu0 %521
  %v524 = vsel %vm512, %v522, 0.0
  %526 = vrot.lane.b32.xlu0 %v464, 120
  %v527 = vpop.permute.xlu0 %526
  %v529 = vadd.f32 %v511, %v527
  %vm530 = vcmp.gt.f32.partialorder %v510, %v511
  %vm531 = vcmp.le.f32.partialorder %v510, %v529
  %vm532 = vmand %vm530, %vm531
  %v533 = vsel %vm532, %v511, 0.0
  %535 = vrot.lane.b32.xlu0 %v511, 64
  %v536 = vpop.permute.xlu0 %535
  %v538 = vsel %vm532, %v536, 0.0
  %v539 = vsel %vm532, %v527, %v513
  %540 = vrot.lane.b32.xlu0 %v464, 56
  %v541 = vpop.permute.xlu0 %540
  %v543 = vsel %vm532, %v541, %v518
  %v544 = vsel %vm532, %v522, %v519
  %545 = vrot.lane.b32.xlu0 %v509, 112
  %v546 = vpop.permute.xlu0 %545
  %v548 = vsel %vm532, %v546, %v524
  %550 = vrot.lane.b32.xlu0 %v470, 112
  %v551 = vpop.permute.xlu0 %550
  %v553 = vadd.f32 %v529, %v551
  %vm554 = vcmp.gt.f32.partialorder %v510, %v529
  %vm555 = vcmp.le.f32.partialorder %v510, %v553
  %vm556 = vmand %vm554, %vm555
  %v557 = vsel %vm556, %v529, %v533
  %559 = vrot.lane.b32.xlu0 %v529, 64
  %v560 = vpop.permute.xlu0 %559
  %v562 = vsel %vm556, %v560, %v538
  %v563 = vsel %vm556, %v551, %v539
  %564 = vrot.lane.b32.xlu0 %v470, 48
  %v565 = vpop.permute.xlu0 %564
  %v567 = vsel %vm556, %v565, %v543
  %v568 = vsel %vm556, %v546, %v544
  %569 = vrot.lane.b32.xlu0 %v509, 104
  %v570 = vpop.permute.xlu0 %569
  %v572 = vsel %vm556, %v570, %v548
  %574 = vrot.lane.b32.xlu0 %v476, 104
  %v575 = vpop.permute.xlu0 %574
  %v577 = vadd.f32 %v553, %v575
  %vm578 = vcmp.gt.f32.partialorder %v510, %v553
  %vm579 = vcmp.le.f32.partialorder %v510, %v577
  %vm580 = vmand %vm578, %vm579
  %v581 = vsel %vm580, %v553, %v557
  %583 = vrot.lane.b32.xlu0 %v553, 64
  %v584 = vpop.permute.xlu0 %583
  %v586 = vsel %vm580, %v584, %v562
  %v587 = vsel %vm580, %v575, %v563
  %588 = vrot.lane.b32.xlu0 %v476, 40
  %v589 = vpop.permute.xlu0 %588
  %v591 = vsel %vm580, %v589, %v567
  %v592 = vsel %vm580, %v570, %v568
  %593 = vrot.lane.b32.xlu0 %v509, 96
  %v594 = vpop.permute.xlu0 %593
  %v596 = vsel %vm580, %v594, %v572
  %598 = vrot.lane.b32.xlu0 %v482, 96
  %v599 = vpop.permute.xlu0 %598
  %v601 = vadd.f32 %v577, %v599
  %vm602 = vcmp.gt.f32.partialorder %v510, %v577
  %vm603 = vcmp.le.f32.partialorder %v510, %v601
  %vm604 = vmand %vm602, %vm603
  %v605 = vsel %vm604, %v577, %v581
  %607 = vrot.lane.b32.xlu0 %v577, 64
  %v608 = vpop.permute.xlu0 %607
  %v610 = vsel %vm604, %v608, %v586
  %v611 = vsel %vm604, %v599, %v587
  %612 = vrot.lane.b32.xlu0 %v482, 32
  %v613 = vpop.permute.xlu0 %612
  %v615 = vsel %vm604, %v613, %v591
  %v616 = vsel %vm604, %v594, %v592
  %617 = vrot.lane.b32.xlu0 %v509, 88
  %v618 = vpop.permute.xlu0 %617
  %v620 = vsel %vm604, %v618, %v596
  %622 = vrot.lane.b32.xlu0 %v488, 88
  %v623 = vpop.permute.xlu0 %622
  %v625 = vadd.f32 %v601, %v623
  %vm626 = vcmp.gt.f32.partialorder %v510, %v601
  %vm627 = vcmp.le.f32.partialorder %v510, %v625
  %vm628 = vmand %vm626, %vm627
  %v629 = vsel %vm628, %v601, %v605
  %631 = vrot.lane.b32.xlu0 %v601, 64
  %v632 = vpop.permute.xlu0 %631
  %v634 = vsel %vm628, %v632, %v610
  %v635 = vsel %vm628, %v623, %v611
  %636 = vrot.lane.b32.xlu0 %v488, 24
  %v637 = vpop.permute.xlu0 %636
  %v639 = vsel %vm628, %v637, %v615
  %v640 = vsel %vm628, %v618, %v616
  %641 = vrot.lane.b32.xlu0 %v509, 80
  %v642 = vpop.permute.xlu0 %641
  %v644 = vsel %vm628, %v642, %v620
  %646 = vrot.lane.b32.xlu0 %v494, 80
  %v647 = vpop.permute.xlu0 %646
  %v649 = vadd.f32 %v625, %v647
  %vm650 = vcmp.gt.f32.partialorder %v510, %v625
  %vm651 = vcmp.le.f32.partialorder %v510, %v649
  %vm652 = vmand %vm650, %vm651
  %v653 = vsel %vm652, %v625, %v629
  %655 = vrot.lane.b32.xlu0 %v625, 64
  %v656 = vpop.permute.xlu0 %655
  %v658 = vsel %vm652, %v656, %v634
  %v659 = vsel %vm652, %v647, %v635
  %660 = vrot.lane.b32.xlu0 %v494, 16
  %v661 = vpop.permute.xlu0 %660
  %v663 = vsel %vm652, %v661, %v639
  %v664 = vsel %vm652, %v642, %v640
  %665 = vrot.lane.b32.xlu0 %v509, 72
  %v666 = vpop.permute.xlu0 %665
  %v668 = vsel %vm652, %v666, %v644
  %vm669 = vcmp.gt.f32.partialorder %v510, %v649
  %v670 = vsel %vm669, %v649, %v653
  %672 = vrot.lane.b32.xlu0 %v649, 64
  %v673 = vpop.permute.xlu0 %672
  %v675 = vsel %vm669, %v673, %v658
  %677 = vrot.lane.b32.xlu0 %v500, 72
  %v678 = vpop.permute.xlu0 %677
  %v680 = vsel %vm669, %v678, %v659
  %681 = vrot.lane.b32.xlu0 %v500, 8
  %v682 = vpop.permute.xlu0 %681
  %v684 = vsel %vm669, %v682, %v663
  %v685 = vsel %vm669, %v666, %v664
  %v686 = vsel %vm669, 0.001, %v668
  %v687 = vsub.f32 %v510, %v670
  %v688 = vrcp.pop %v680
  %v689 = vmul.f32 %v687, %v688
  %v690 = vmax.f32 %v689, 0.0
  %v691 = vmin.f32 %v690, 1.0
  %v692 = vsub.f32 1.0, %v691
  %v693 = vmul.f32 %v685, %v691
  %v694 = vmul.f32 %v693, %v691
  %v695 = vmul.f32 %v691, 2.0
  %v696 = vmul.f32 %v695, %v692
  %v697 = vadd.f32 %v694, %v696
  %v698 = vmul.f32 %v684, %v697
  %v699 = vsub.f32 %v686, %v685
  %v700 = vmul.f32 %v699, %v691
  %v701 = vadd.f32 %v685, %v700
  %v702 = vrcp.pop %v701
  %v703 = vmul.f32 %v698, %v702
  %v704 = vadd.f32 %v675, %v703
  %705 = vst.msk [vmem:[%s12] sm:$0xff] %vm52, %v704
  %v706 = vmul.f32 %v696, %v686
  %v707 = vadd.f32 %v706, %v685
  %v708 = vmul.f32 %v684, %v707
  %v709 = vmul.f32 %v708, %v707
  %v710 = vmul.f32 %v709, %v702
  %v711 = vlog2.pop %v710
  %v712 = vmul.f32 %v711, 0.6931472
  %v713 = vsel %vm52, %v712, 0.0
  %714 = vadd.xlane.f32.xlu0 %v713
  %v715 = vpop.xlane.xlu0 %714
  %vm716 = vcmask 7168
  %717 = vst.msk [vmem:[%s13] sm:$0xff] %vm716, %v715
  // Predicated region
  $region50: #{coupling_forward.1} parent=0 // pred_check
    _
  $region51: #{coupling_forward.1} parent=0 // pred_check_branch
    %719 = sbr.rel (0) target = $region53
  $region52: #{coupling_forward.1} parent=0 // pred_region
    _
  $region53: #{coupling_forward.1} parent=0 // pred_fallthru
    _
  // Predicated region
  $region54: #{coupling_forward.1} parent=0 // pred_check
    _
  $region55: #{coupling_forward.1} parent=0 // pred_check_branch
    %721 = sbr.rel (0) target = $region57
  $region56: #{coupling_forward.1} parent=0 // pred_region
    _
  $region57: #{coupling_forward.1} parent=0 // pred_fallthru
    _
  // Predicated region
  $region58: #{coupling_forward.1} parent=0 // pred_check
    _
  $region59: #{coupling_forward.1} parent=0 // pred_check_branch
    %723 = sbr.rel (0) target = $region61
  $region60: #{coupling_forward.1} parent=0 // pred_region
    _
  $region61: #{coupling_forward.1} parent=0 // pred_fallthru
    _
  // Predicated region
  $region62: #{coupling_forward.1} parent=0 // pred_check
    _
  $region63: #{coupling_forward.1} parent=0 // pred_check_branch
    %725 = sbr.rel (0) target = $region65
  $region64: #{coupling_forward.1} parent=0 // pred_region
    _
  $region65: #{coupling_forward.1} parent=0 // pred_fallthru
    _

</llo_original>
